<compile_context>
chip_gen: v7x
topology: tpu7x:2x2x1
jax: 0.10.0
libtpu: 0.0.40
codegen_flags: <defaults>
</compile_context>

<pallas_src>
import jax
import jax.numpy as jnp
from jax.experimental import pallas as pl
from jax.experimental.pallas import tpu as pltpu


def _round_up(n, m):
    return ((n + m - 1) // m) * m


# ----------------------------- kernel ---------------------------------------


def _mlp_kernel(x_ref, d_ref, w0_ref, w0d_ref, b0_ref, w1_ref, b1_ref,
                w2_ref, b2_ref, o_ref):
    # fc0/fc1 (embedding part): [tb, De] bf16 @ [De, 128] bf16 -> f32 acc (MXU).
    x = x_ref[...].astype(jnp.bfloat16)
    h = jnp.dot(x, w0_ref[...], preferred_element_type=jnp.float32)
    # Fused "concat distance column": rank-1 VPU update.  w0d_ref is pre-scaled
    # by flag / distance_max in the wrapper (zeroed on the fc1 branch).
    h = h + d_ref[...] * w0d_ref[...] + b0_ref[...]
    h = jnp.maximum(h, 0.0)
    # fc2: [tb, 128] @ [128, 64] bf16 -> f32 acc.
    h = jnp.dot(h.astype(jnp.bfloat16), w1_ref[...],
                preferred_element_type=jnp.float32)
    h = jnp.maximum(h + b1_ref[...], 0.0)
    # fc3 (64 -> 1): VPU multiply + lane reduction (avoids a 1-column MXU matmul).
    y = jnp.sum(h * w2_ref[...], axis=-1, keepdims=True)        # [tb, 1] f32
    o_ref[...] = y + b2_ref[...]


def fused_mlp(x, dist, w0, w0d, b0, w1, b1, w2_row, b2, *, block_b=4096):
    """Fused 3-layer MLP with the distance column folded in as a rank-1 update.

    x:      [B, De]  (any float dtype; cast to bf16 in-kernel)
    dist:   [B, 1]   f32
    w0:     [De,128] bf16     w0d: [1,128] f32 (pre-scaled)   b0: [1,128] f32
    w1:     [128,64] bf16     b1:  [1,64]  f32
    w2_row: [1,64]   f32      b2:  [1,1]   f32
    returns [B, 1] f32
    """
    B, De = x.shape
    H0 = w0.shape[1]          # 128
    H1 = w1.shape[1]          # 64
    tb = int(min(block_b, _round_up(B, 8)))   # tile rows (multiple of 8)
    grid = (pl.cdiv(B, tb),)                  # ragged last tile; no batch padding

    flops = 2 * B * (De * H0 + H0 * H1 + H1) + 2 * B * H0
    bytes_accessed = (
        x.size * x.dtype.itemsize            # streamed embeddings
        + dist.size * 4                      # streamed distances
        + w0.size * 2 + w1.size * 2          # bf16 weights (resident)
        + (w0d.size + b0.size + b1.size + w2_row.size + b2.size) * 4
        + B * 4                              # output writeback
    )

    return pl.pallas_call(
        _mlp_kernel,
        out_shape=jax.ShapeDtypeStruct((B, 1), jnp.float32),
        grid=grid,
        in_specs=[
            pl.BlockSpec((tb, De), lambda i: (i, 0)),     # embeddings (streamed)
            pl.BlockSpec((tb, 1), lambda i: (i, 0)),      # distances  (streamed)
            pl.BlockSpec((De, H0), lambda i: (0, 0)),     # w0 embed part (resident)
            pl.BlockSpec((1, H0), lambda i: (0, 0)),      # w0 distance row (scaled)
            pl.BlockSpec((1, H0), lambda i: (0, 0)),      # b0
            pl.BlockSpec((H0, H1), lambda i: (0, 0)),     # w1
            pl.BlockSpec((1, H1), lambda i: (0, 0)),      # b1
            pl.BlockSpec((1, H1), lambda i: (0, 0)),      # w2 row
            pl.BlockSpec((1, 1), lambda i: (0, 0)),       # b2
        ],
        out_specs=pl.BlockSpec((tb, 1), lambda i: (i, 0)),
        compiler_params=pltpu.CompilerParams(
            dimension_semantics=("parallel",),
        ),
        cost_estimate=pl.CostEstimate(
            flops=flops, transcendentals=0, bytes_accessed=bytes_accessed),
    )(x, dist, w0, w0d, b0, w1, b1, w2_row, b2)


# ----------------------------- params / wrapper ------------------------------


def init_params(embedding_len, key=0):
    """Deterministic init matching nn.Linear shapes (weights stored as [in, out])."""
    k = jax.random.PRNGKey(key)
    ks = jax.random.split(k, 8)
    d0 = embedding_len * 3 + 1   # fc0 input dim
    d1 = embedding_len * 3       # fc1 input dim

    def lin(kw, kb, fan_in, fan_out):
        bound = 1.0 / jnp.sqrt(fan_in)
        w = jax.random.uniform(kw, (fan_in, fan_out), jnp.float32, -bound, bound)
        b = jax.random.uniform(kb, (1, fan_out), jnp.float32, -bound, bound)
        return w, b

    fc0_w, fc0_b = lin(ks[0], ks[1], d0, 128)
    fc1_w, fc1_b = lin(ks[2], ks[3], d1, 128)
    fc2_w, fc2_b = lin(ks[4], ks[5], 128, 64)
    fc3_w, fc3_b = lin(ks[6], ks[7], 64, 1)
    return dict(fc0=(fc0_w, fc0_b), fc1=(fc1_w, fc1_b),
                fc2=(fc2_w, fc2_b), fc3=(fc3_w, fc3_b))


def model_forward(params, input_embed, demand_type, distances, distance_max,
                  *, block_b=4096):
    """JAX/Pallas equivalent of Model.forward.

    The fc0-vs-fc1 branch is resolved on-device by selecting between the two
    (tiny) weight tensors with jnp.where, so this wrapper is jit/vmap-safe and
    performs no host sync. Only O(weights)-sized XLA ops run outside the kernel;
    the batch-sized tensors go straight into pallas_call.
    """
    flag = jnp.any(demand_type == 1)
    De = input_embed.shape[-1]
    fc0_w, fc0_b = params["fc0"]
    fc1_w, fc1_b = params["fc1"]
    fc2_w, fc2_b = params["fc2"]
    fc3_w, fc3_b = params["fc3"]

    # Select fc0 (embedding rows only) vs fc1; both are [De, 128].
    w0e = jnp.where(flag, fc0_w[:De, :], fc1_w).astype(jnp.bfloat16)
    b0 = jnp.where(flag, fc0_b, fc1_b).astype(jnp.float32)
    # Distance row of fc0, pre-scaled by 1/distance_max and gated by the branch
    # flag (so the in-kernel rank-1 update is a no-op on the fc1 branch).
    inv = jnp.where(flag, 1.0 / jnp.asarray(distance_max, jnp.float32), 0.0)
    w0d = (fc0_w[De:De + 1, :] * inv).astype(jnp.float32)

    w1 = fc2_w.astype(jnp.bfloat16)
    b1 = fc2_b.astype(jnp.float32)
    w2_row = fc3_w.reshape(1, -1).astype(jnp.float32)    # [1, 64]
    b2 = fc3_b.reshape(1, 1).astype(jnp.float32)

    dist2d = distances.astype(jnp.float32).reshape(-1, 1)  # [B, 1] (tiny)
    return fused_mlp(input_embed, dist2d, w0e, w0d, b0, w1, b1, w2_row, b2,
                     block_b=block_b)


def _ref_forward(params, input_embed, demand_type, distances, distance_max):
    """Pure-JAX reference that mimics the kernel's bf16 operand rounding."""
    flag = jnp.any(demand_type == 1)
    De = input_embed.shape[-1]
    fc0_w, fc0_b = params["fc0"]
    fc1_w, fc1_b = params["fc1"]
    w1, b1 = params["fc2"]
    w2, b2 = params["fc3"]

    w0e = jnp.where(flag, fc0_w[:De, :], fc1_w)
    b0 = jnp.where(flag, fc0_b, fc1_b)
    inv = jnp.where(flag, 1.0 / jnp.asarray(distance_max, jnp.float32), 0.0)
    w0d = fc0_w[De:De + 1, :] * inv

    hp = jax.lax.Precision.HIGHEST
    bf = lambda a: a.astype(jnp.bfloat16).astype(jnp.float32)
    h = jnp.dot(bf(input_embed), bf(w0e), precision=hp)
    h = jnp.maximum(h + distances.astype(jnp.float32)[:, None] * w0d + b0, 0.0)
    h = jnp.maximum(jnp.dot(bf(h), bf(w1), precision=hp) + b1, 0.0)
    return jnp.dot(h, w2.astype(jnp.float32), precision=hp) + b2


# ----------------------------- self test -------------------------------------


if __name__ == "__main__":
    # Small synthetic shapes consistent with the module: embedding_len E = 16,
    # so input_embed has 3*E = 48 features; batch = 8.
    E = 16
    B = 8

    key = jax.random.PRNGKey(0)
    k_embed, k_dist = jax.random.split(key)

    input_embed = jax.random.normal(k_embed, (B, 3 * E), jnp.float32)
    distances = jax.random.uniform(k_dist, (B,), jnp.float32, 10.0, 1000.0)
    distance_max = 1000.0
    # include at least one "shorter-route" demand so the fc0 (distance) path runs
    demand_type = jnp.array([0, 1, 0, 1, 0, 0, 1, 0], jnp.int32)

    params = init_params(E, key=0)

    # fc0 (distance-augmented) branch
    out = jax.block_until_ready(
        model_forward(params, input_embed, demand_type, distances, distance_max))
    assert out.shape == (B, 1)
    ref = _ref_forward(params, input_embed, demand_type, distances, distance_max)
    assert jnp.allclose(out, ref, atol=5e-3, rtol=5e-3), (
        float(jnp.max(jnp.abs(out - ref))))

    # fc1 (no-distance) branch
    demand_zero = jnp.zeros((B,), jnp.int32)
    out2 = jax.block_until_ready(
        model_forward(params, input_embed, demand_zero, distances, distance_max))
    assert out2.shape == (B, 1)
    ref2 = _ref_forward(params, input_embed, demand_zero, distances, distance_max)
    assert jnp.allclose(out2, ref2, atol=5e-3, rtol=5e-3), (
        float(jnp.max(jnp.abs(out2 - ref2))))

    # multi-tile ragged batch (exercises cdiv grid + partial last block, no padding)
    B2 = 300
    k3, k4 = jax.random.split(jax.random.PRNGKey(1))
    embed2 = jax.random.normal(k3, (B2, 3 * E), jnp.float32)
    dist2 = jax.random.uniform(k4, (B2,), jnp.float32, 10.0, 1000.0)
    dt2 = (jnp.arange(B2) % 5 == 0).astype(jnp.int32)
    out3 = jax.block_until_ready(
        model_forward(params, embed2, dt2, dist2, distance_max, block_b=128))
    assert out3.shape == (B2, 1)
    ref3 = _ref_forward(params, embed2, dt2, dist2, distance_max)
    assert jnp.allclose(out3, ref3, atol=5e-3, rtol=5e-3), (
        float(jnp.max(jnp.abs(out3 - ref3))))

    print("KERNEL_OK")
</pallas_src>

<mosaic_0001>
module attributes {stable_mosaic.version = 11 : i64} {
  func.func @_mlp_kernel(%arg0: i32, %arg1: memref<8x48xf32, #tpu.memory_space<vmem>>, %arg2: memref<8x1xf32, #tpu.memory_space<vmem>>, %arg3: memref<48x128xbf16, #tpu.memory_space<vmem>>, %arg4: memref<1x128xf32, #tpu.memory_space<vmem>>, %arg5: memref<1x128xf32, #tpu.memory_space<vmem>>, %arg6: memref<128x64xbf16, #tpu.memory_space<vmem>>, %arg7: memref<1x64xf32, #tpu.memory_space<vmem>>, %arg8: memref<1x64xf32, #tpu.memory_space<vmem>>, %arg9: memref<1x1xf32, #tpu.memory_space<vmem>>, %arg10: memref<8x1xf32, #tpu.memory_space<vmem>>) attributes {dimension_semantics = [#tpu.dimension_semantics<parallel>], iteration_bounds = array<i64: 1>, scalar_prefetch = 0 : i64, scratch_operands = 0 : i64, tpu.core_type = #tpu.core_type<tc>, window_params = [{transform_indices = @transform_0, window_bounds = array<i64: 8, 48>}, {transform_indices = @transform_1, window_bounds = array<i64: 8, 1>}, {pipeline_mode = #tpu.pipeline_mode<synchronous>, transform_indices = @transform_2, window_bounds = array<i64: 48, 128>}, {pipeline_mode = #tpu.pipeline_mode<synchronous>, transform_indices = @transform_3, window_bounds = array<i64: 1, 128>}, {pipeline_mode = #tpu.pipeline_mode<synchronous>, transform_indices = @transform_4, window_bounds = array<i64: 1, 128>}, {pipeline_mode = #tpu.pipeline_mode<synchronous>, transform_indices = @transform_5, window_bounds = array<i64: 128, 64>}, {pipeline_mode = #tpu.pipeline_mode<synchronous>, transform_indices = @transform_6, window_bounds = array<i64: 1, 64>}, {pipeline_mode = #tpu.pipeline_mode<synchronous>, transform_indices = @transform_7, window_bounds = array<i64: 1, 64>}, {pipeline_mode = #tpu.pipeline_mode<synchronous>, transform_indices = @transform_8, window_bounds = array<i64: 1, 1>}, {transform_indices = @transform_9, window_bounds = array<i64: 8, 1>}]} {
    %c0 = arith.constant 0 : index
    %c0_0 = arith.constant 0 : index
    %0 = vector.load %arg1[%c0, %c0_0] : memref<8x48xf32, #tpu.memory_space<vmem>>, vector<8x48xf32>
    %1 = arith.truncf %0 : vector<8x48xf32> to vector<8x48xbf16>
    %c0_1 = arith.constant 0 : index
    %c0_2 = arith.constant 0 : index
    %2 = vector.load %arg3[%c0_1, %c0_2] : memref<48x128xbf16, #tpu.memory_space<vmem>>, vector<48x128xbf16>
    %cst = arith.constant dense<0.000000e+00> : vector<8x128xf32>
    %3 = tpu.matmul %1, %2, %cst {dimension_numbers = #tpu.dot_dimension_numbers<[1], [0], [0], [1], [0, 0, 1, 1], [], []>} : vector<8x48xbf16>, vector<48x128xbf16>, vector<8x128xf32> -> vector<8x128xf32>
    %c0_3 = arith.constant 0 : index
    %c0_4 = arith.constant 0 : index
    %4 = vector.load %arg2[%c0_3, %c0_4] : memref<8x1xf32, #tpu.memory_space<vmem>>, vector<8x1xf32>
    %c0_5 = arith.constant 0 : index
    %c0_6 = arith.constant 0 : index
    %5 = vector.load %arg4[%c0_5, %c0_6] : memref<1x128xf32, #tpu.memory_space<vmem>>, vector<1x128xf32>
    %6 = vector.broadcast %4 : vector<8x1xf32> to vector<8x128xf32>
    %7 = vector.broadcast %5 : vector<1x128xf32> to vector<8x128xf32>
    %8 = arith.mulf %6, %7 : vector<8x128xf32>
    %9 = arith.addf %3, %8 : vector<8x128xf32>
    %c0_7 = arith.constant 0 : index
    %c0_8 = arith.constant 0 : index
    %10 = vector.load %arg5[%c0_7, %c0_8] : memref<1x128xf32, #tpu.memory_space<vmem>>, vector<1x128xf32>
    %11 = vector.broadcast %10 : vector<1x128xf32> to vector<8x128xf32>
    %12 = arith.addf %9, %11 : vector<8x128xf32>
    %cst_9 = arith.constant 0.000000e+00 : f32
    %13 = vector.broadcast %cst_9 : f32 to vector<8x128xf32>
    %14 = arith.maximumf %12, %13 : vector<8x128xf32>
    %15 = arith.truncf %14 : vector<8x128xf32> to vector<8x128xbf16>
    %c0_10 = arith.constant 0 : index
    %c0_11 = arith.constant 0 : index
    %16 = vector.load %arg6[%c0_10, %c0_11] : memref<128x64xbf16, #tpu.memory_space<vmem>>, vector<128x64xbf16>
    %cst_12 = arith.constant dense<0.000000e+00> : vector<8x64xf32>
    %17 = tpu.matmul %15, %16, %cst_12 {dimension_numbers = #tpu.dot_dimension_numbers<[1], [0], [0], [1], [0, 0, 1, 1], [], []>} : vector<8x128xbf16>, vector<128x64xbf16>, vector<8x64xf32> -> vector<8x64xf32>
    %c0_13 = arith.constant 0 : index
    %c0_14 = arith.constant 0 : index
    %18 = vector.load %arg7[%c0_13, %c0_14] : memref<1x64xf32, #tpu.memory_space<vmem>>, vector<1x64xf32>
    %19 = vector.broadcast %18 : vector<1x64xf32> to vector<8x64xf32>
    %20 = arith.addf %17, %19 : vector<8x64xf32>
    %cst_15 = arith.constant 0.000000e+00 : f32
    %21 = vector.broadcast %cst_15 : f32 to vector<8x64xf32>
    %22 = arith.maximumf %20, %21 : vector<8x64xf32>
    %c0_16 = arith.constant 0 : index
    %c0_17 = arith.constant 0 : index
    %23 = vector.load %arg8[%c0_16, %c0_17] : memref<1x64xf32, #tpu.memory_space<vmem>>, vector<1x64xf32>
    %24 = vector.broadcast %23 : vector<1x64xf32> to vector<8x64xf32>
    %25 = arith.mulf %22, %24 : vector<8x64xf32>
    %cst_18 = arith.constant dense<0.000000e+00> : vector<8xf32>
    %26 = vector.multi_reduction <add>, %25, %cst_18 [1] : vector<8x64xf32> to vector<8xf32>
    %27 = vector.shape_cast %26 : vector<8xf32> to vector<8x1xf32>
    %c0_19 = arith.constant 0 : index
    %c0_20 = arith.constant 0 : index
    %28 = vector.load %arg9[%c0_19, %c0_20] : memref<1x1xf32, #tpu.memory_space<vmem>>, vector<1x1xf32>
    %29 = vector.broadcast %28 : vector<1x1xf32> to vector<8x1xf32>
    %30 = arith.addf %27, %29 : vector<8x1xf32>
    %c0_21 = arith.constant 0 : index
    %c0_22 = arith.constant 0 : index
    %31 = vector.load %arg10[%c0_21, %c0_22] : memref<8x1xf32, #tpu.memory_space<vmem>>, vector<8x1xf32>
    tpu.vector_store %arg10[%c0_21, %c0_22], %30 {strides = array<i32>} : memref<8x1xf32, #tpu.memory_space<vmem>>, vector<8x1xf32>,
    return
  }
  func.func @transform_0(%arg0: i32) -> (i32, i32) {
    %c0_i32 = arith.constant 0 : i32
    %c0_i32_0 = arith.constant 0 : i32
    return %arg0, %c0_i32 : i32, i32
  }
  func.func @transform_1(%arg0: i32) -> (i32, i32) {
    %c0_i32 = arith.constant 0 : i32
    %c0_i32_0 = arith.constant 0 : i32
    return %arg0, %c0_i32 : i32, i32
  }
  func.func @transform_2(%arg0: i32) -> (i32, i32) {
    %c0_i32 = arith.constant 0 : i32
    %c0_i32_0 = arith.constant 0 : i32
    %c0_i32_1 = arith.constant 0 : i32
    return %c0_i32, %c0_i32_0 : i32, i32
  }
  func.func @transform_3(%arg0: i32) -> (i32, i32) {
    %c0_i32 = arith.constant 0 : i32
    %c0_i32_0 = arith.constant 0 : i32
    %c0_i32_1 = arith.constant 0 : i32
    return %c0_i32, %c0_i32_0 : i32, i32
  }
  func.func @transform_4(%arg0: i32) -> (i32, i32) {
    %c0_i32 = arith.constant 0 : i32
    %c0_i32_0 = arith.constant 0 : i32
    %c0_i32_1 = arith.constant 0 : i32
    return %c0_i32, %c0_i32_0 : i32, i32
  }
  func.func @transform_5(%arg0: i32) -> (i32, i32) {
    %c0_i32 = arith.constant 0 : i32
    %c0_i32_0 = arith.constant 0 : i32
    %c0_i32_1 = arith.constant 0 : i32
    return %c0_i32, %c0_i32_0 : i32, i32
  }
  func.func @transform_6(%arg0: i32) -> (i32, i32) {
    %c0_i32 = arith.constant 0 : i32
    %c0_i32_0 = arith.constant 0 : i32
    %c0_i32_1 = arith.constant 0 : i32
    return %c0_i32, %c0_i32_0 : i32, i32
  }
  func.func @transform_7(%arg0: i32) -> (i32, i32) {
    %c0_i32 = arith.constant 0 : i32
    %c0_i32_0 = arith.constant 0 : i32
    %c0_i32_1 = arith.constant 0 : i32
    return %c0_i32, %c0_i32_0 : i32, i32
  }
  func.func @transform_8(%arg0: i32) -> (i32, i32) {
    %c0_i32 = arith.constant 0 : i32
    %c0_i32_0 = arith.constant 0 : i32
    %c0_i32_1 = arith.constant 0 : i32
    return %c0_i32, %c0_i32_0 : i32, i32
  }
  func.func @transform_9(%arg0: i32) -> (i32, i32) {
    %c0_i32 = arith.constant 0 : i32
    %c0_i32_0 = arith.constant 0 : i32
    return %arg0, %c0_i32 : i32, i32
  }
}

</mosaic_0001>

<llo_original>
// kernel: tpu_custom_call.1
$region0: #{tpu_custom_call.1}
  #allocation0 [shape = 'u32[]', space=smem, size = 0x4, offset = 0x4, fixed_abs, tag = 'smem constant byte address 0x4 - core index']
  #allocation1 [shape = 'u32[144,128]{1,0:T(1,128)}', space=vmem, size = 0x12000, scoped, tag = 'internal scratch']
  #allocation2 [shape = 'f32[1,1]{1,0:T(1,128)S(1)}', space=vmem, size = 0x200, scoped, tag = 'scoped memory for tpu_custom_call.1']
  %s0 = inlined_call_operand.vmem [shape: f32[8,48], index: 0, kind: input, shape index: {}]
  %s1 = inlined_call_operand.vmem [shape: f32[8,1], index: 1, kind: input, shape index: {}]
  %s2 = inlined_call_operand.vmem [shape: bf16[48,128], index: 2, kind: input, shape index: {}]
  %s3 = inlined_call_operand.vmem [shape: f32[1,128], index: 3, kind: input, shape index: {}]
  %s4 = inlined_call_operand.vmem [shape: f32[1,128], index: 4, kind: input, shape index: {}]
  %s5 = inlined_call_operand.vmem [shape: bf16[128,64], index: 5, kind: input, shape index: {}]
  %s6 = inlined_call_operand.vmem [shape: f32[1,64], index: 6, kind: input, shape index: {}]
  %s7 = inlined_call_operand.vmem [shape: f32[1,64], index: 7, kind: input, shape index: {}]
  %s8 = inlined_call_operand.<no memory space> [shape: f32[1,1], index: 8, kind: input, shape index: {}]
  %s9 = inlined_call_operand.vmem [shape: f32[8,1], index: 9, kind: output, shape index: {}]
  %s10 = sld [smem:[#allocation0]]
  $region46: #{tpu_custom_call.1} parent=0
    _
  %s12 = ssub.s32 1, %s10
  %s13 = scalar_select 0, %s12, %s10
  %v14 = vstv %s8
  %15 = vst [vmem:[#allocation2] sm:$0x1] %v14
  // Predicated region
  $region2: #{tpu_custom_call.1} parent=0 // pred_check
    _
  $region3: #{tpu_custom_call.1} parent=0 // pred_check_branch
    %17 = sbr.rel (0) target = $region5
  $region4: #{tpu_custom_call.1} parent=0 // pred_region
    _
  $region5: #{tpu_custom_call.1} parent=0 // pred_fallthru
    _
  // Predicated region
  $region6: #{tpu_custom_call.1} parent=0 // pred_check
    _
  $region7: #{tpu_custom_call.1} parent=0 // pred_check_branch
    %19 = sbr.rel (0) target = $region9
  $region8: #{tpu_custom_call.1} parent=0 // pred_region
    _
  $region9: #{tpu_custom_call.1} parent=0 // pred_fallthru
    _
  // Predicated region
  $region10: #{tpu_custom_call.1} parent=0 // pred_check
    _
  $region11: #{tpu_custom_call.1} parent=0 // pred_check_branch
    %21 = sbr.rel (0) target = $region13
  $region12: #{tpu_custom_call.1} parent=0 // pred_region
    _
  $region13: #{tpu_custom_call.1} parent=0 // pred_fallthru
    _
  // Predicated region
  $region14: #{tpu_custom_call.1} parent=0 // pred_check
    _
  $region15: #{tpu_custom_call.1} parent=0 // pred_check_branch
    %23 = sbr.rel (0) target = $region17
  $region16: #{tpu_custom_call.1} parent=0 // pred_region
    _
  $region17: #{tpu_custom_call.1} parent=0 // pred_fallthru
    _
  // Predicated region
  $region18: #{tpu_custom_call.1} parent=0 // pred_check
    _
  $region19: #{tpu_custom_call.1} parent=0 // pred_check_branch
    %25 = sbr.rel (0) target = $region21
  $region20: #{tpu_custom_call.1} parent=0 // pred_region
    _
  $region21: #{tpu_custom_call.1} parent=0 // pred_fallthru
    _
  // Predicated region
  $region22: #{tpu_custom_call.1} parent=0 // pred_check
    _
  $region23: #{tpu_custom_call.1} parent=0 // pred_check_branch
    %27 = sbr.rel (0) target = $region25
  $region24: #{tpu_custom_call.1} parent=0 // pred_region
    _
  $region25: #{tpu_custom_call.1} parent=0 // pred_fallthru
    _
  // Predicated region
  $region26: #{tpu_custom_call.1} parent=0 // pred_check
    _
  $region27: #{tpu_custom_call.1} parent=0 // pred_check_branch
    %29 = sbr.rel (0) target = $region29
  $region28: #{tpu_custom_call.1} parent=0 // pred_region
    _
  $region29: #{tpu_custom_call.1} parent=0 // pred_fallthru
    _
  // Predicated region
  $region30: #{tpu_custom_call.1} parent=0 // pred_check
    _
  $region31: #{tpu_custom_call.1} parent=0 // pred_check_branch
    %31 = sbr.rel (0) target = $region33
  $region32: #{tpu_custom_call.1} parent=0 // pred_region
    _
  $region33: #{tpu_custom_call.1} parent=0 // pred_fallthru
    _
  // Predicated region
  $region34: #{tpu_custom_call.1} parent=0 // pred_check
    _
  $region35: #{tpu_custom_call.1} parent=0 // pred_check_branch
    %33 = sbr.rel (0) target = $region37
  $region36: #{tpu_custom_call.1} parent=0 // pred_region
    _
  $region37: #{tpu_custom_call.1} parent=0 // pred_fallthru
    _
  %v35 = vld [vmem:[%s0] sm:$0xff]
  %v36 = vpack.c.bf16 %v35, %v35
  %v37 = vld [vmem:[%s2] sm:$0xf]
  %v38 = vld [vmem:[%s2 + $0x4] sm:$0xf]
  %v39 = vld [vmem:[%s2 + $0x8] sm:$0xf]
  %v40 = vld [vmem:[%s2 + $0xc] sm:$0xf]
  %v41 = vld [vmem:[%s2 + $0x10] sm:$0xf]
  %v42 = vld [vmem:[%s2 + $0x14] sm:$0xf]
  %v43 = vld [vmem:[%s1] sm:$0xff]
  %v44 = vld [vmem:[%s3] sm:$0x1]
  %46 = vset.pattern.permute.xlu0 0
  %47 = vperm.xlu0 %46, %v43
  %v48 = vpop.permute.xlu0 %47
  %v51 = vlaneseq
  %v52 = vshrl.u32 %v51, 7
  %v53 = vsub.s32 0, %v52
  %v54 = vrot.slane %v44, %v53
  %v56 = vmul.f32 %v48, %v54
  %v63 = vunpack.c.l.b16 %v37
  %v64 = vunpack.c.l.b16 %v38
  %v65 = vunpack.c.l.b16 %v39
  %v66 = vunpack.c.l.b16 %v40
  %v67 = vunpack.c.l.b16 %v41
  %v68 = vunpack.c.l.b16 %v42
  %v69 = vpack.c.b16 %v64, %v63
  %v70 = vpack.c.b16 %v66, %v65
  %v71 = vpack.c.b16 %v68, %v67
  %vm75 = vcmask 392192
  %v77 = vsel %vm75, %v36, 0
  %79 = vmatprep.subr.bf16.mxu0 0
  %80 = vmatpush1.bf16.msra.mxu0 %v69
  %81 = vmatprep.subr.bf16.mxu0 0
  %82 = vmatpush1.bf16.msra.mxu0 %v70
  %83 = vmatprep.subr.bf16.mxu0 0
  %84 = vmatpush1.bf16.msra.mxu0 %v71
  %85 = vmatprep.subr.bf16.mxu0 0
  %86 = vmatpush1.bf16.msra.mxu0 0
  %87 = vmatprep.subr.bf16.mxu0 0
  %88 = vmatpush1.bf16.msra.mxu0 0
  %89 = vmatprep.subr.bf16.mxu0 0
  %90 = vmatpush1.bf16.msra.mxu0 0
  %91 = vmatprep.subr.bf16.mxu0 0
  %92 = vmatpush1.bf16.msra.mxu0 0
  %93 = vmatprep.subr.bf16.mxu0 0
  %94 = vmatpush1.bf16.msra.mxu0 0
  %95 = vmatprep.subr.bf16.mxu0 0
  %96 = vmatpush1.bf16.msra.mxu0 0
  %97 = vmatprep.subr.bf16.mxu0 0
  %98 = vmatpush1.bf16.msra.mxu0 0
  %99 = vmatprep.subr.bf16.mxu0 0
  %100 = vmatpush1.bf16.msra.mxu0 0
  %101 = vmatprep.subr.bf16.mxu0 0
  %102 = vmatpush1.bf16.msra.mxu0 0
  %103 = vmatprep.subr.bf16.mxu0 0
  %104 = vmatpush1.bf16.msra.mxu0 0
  %105 = vmatprep.subr.bf16.mxu0 0
  %106 = vmatpush1.bf16.msra.mxu0 0
  %107 = vmatprep.subr.bf16.mxu0 0
  %108 = vmatpush1.bf16.msra.mxu0 0
  %109 = vmatprep.subr.bf16.mxu0 0
  %110 = vmatpush1.bf16.msra.mxu0 0
  %111 = vmatprep.mubr.bf16.mxu0 0
  %112 = vmatmul.mubr.bf16.gmra.mrb[0].mxu0 %v77
  %v113 = vpop.f32.mrb[0].mxu0
  %v114 = vadd.f32 %v56, %v113
  %v115 = vpop.f32.mrb[0].mxu0
  %v116 = vpop.f32.mrb[0].mxu0
  %v117 = vpop.f32.mrb[0].mxu0
  %118 = vdwg.mxu0
  %v119 = vld [vmem:[%s4] sm:$0x1]
  %v121 = vlaneseq
  %v122 = vshrl.u32 %v121, 7
  %v123 = vsub.s32 0, %v122
  %v124 = vrot.slane %v119, %v123
  %v126 = vadd.f32 %v114, %v124
  %v127 = vmax.f32 %v126, 0.0
  %v128 = vpack.c.bf16 %v127, %v127
  %v129 = vld [vmem:[%s5] sm:$0xf]
  %v130 = vld [vmem:[%s5 + $0x4] sm:$0xf]
  %v131 = vld [vmem:[%s5 + $0x8] sm:$0xf]
  %v132 = vld [vmem:[%s5 + $0xc] sm:$0xf]
  %v133 = vld [vmem:[%s5 + $0x10] sm:$0xf]
  %v134 = vld [vmem:[%s5 + $0x14] sm:$0xf]
  %v135 = vld [vmem:[%s5 + $0x18] sm:$0xf]
  %v136 = vld [vmem:[%s5 + $0x1c] sm:$0xf]
  %v137 = vld [vmem:[%s5 + $0x20] sm:$0xf]
  %v138 = vld [vmem:[%s5 + $0x24] sm:$0xf]
  %v139 = vld [vmem:[%s5 + $0x28] sm:$0xf]
  %v140 = vld [vmem:[%s5 + $0x2c] sm:$0xf]
  %v141 = vld [vmem:[%s5 + $0x30] sm:$0xf]
  %v142 = vld [vmem:[%s5 + $0x34] sm:$0xf]
  %v143 = vld [vmem:[%s5 + $0x38] sm:$0xf]
  %v144 = vld [vmem:[%s5 + $0x3c] sm:$0xf]
  %v145 = vld [vmem:[%s6] sm:$0x1]
  %v147 = vlaneseq
  %v148 = vshrl.u32 %v147, 7
  %v149 = vsub.s32 0, %v148
  %v150 = vrot.slane %v145, %v149
  %v168 = vunpack.c.l.b16 %v129
  %v169 = vunpack.c.l.b16 %v130
  %v170 = vunpack.c.l.b16 %v131
  %v171 = vunpack.c.l.b16 %v132
  %v172 = vunpack.c.l.b16 %v133
  %v173 = vunpack.c.l.b16 %v134
  %v174 = vunpack.c.l.b16 %v135
  %v175 = vunpack.c.l.b16 %v136
  %v176 = vunpack.c.l.b16 %v137
  %v177 = vunpack.c.l.b16 %v138
  %v178 = vunpack.c.l.b16 %v139
  %v179 = vunpack.c.l.b16 %v140
  %v180 = vunpack.c.l.b16 %v141
  %v181 = vunpack.c.l.b16 %v142
  %v182 = vunpack.c.l.b16 %v143
  %v183 = vunpack.c.l.b16 %v144
  %v184 = vpack.c.b16 %v169, %v168
  %v185 = vpack.c.b16 %v171, %v170
  %v186 = vpack.c.b16 %v173, %v172
  %v187 = vpack.c.b16 %v175, %v174
  %v188 = vpack.c.b16 %v177, %v176
  %v189 = vpack.c.b16 %v179, %v178
  %v190 = vpack.c.b16 %v181, %v180
  %v191 = vpack.c.b16 %v183, %v182
  %200 = vmatprep.subr.bf16.mxu0 0
  %201 = vmatpush1.bf16.msra.mxu0 %v184
  %202 = vmatprep.subr.bf16.mxu0 0
  %203 = vmatpush1.bf16.msra.mxu0 %v185
  %204 = vmatprep.subr.bf16.mxu0 0
  %205 = vmatpush1.bf16.msra.mxu0 %v186
  %206 = vmatprep.subr.bf16.mxu0 0
  %207 = vmatpush1.bf16.msra.mxu0 %v187
  %208 = vmatprep.subr.bf16.mxu0 0
  %209 = vmatpush1.bf16.msra.mxu0 %v188
  %210 = vmatprep.subr.bf16.mxu0 0
  %211 = vmatpush1.bf16.msra.mxu0 %v189
  %212 = vmatprep.subr.bf16.mxu0 0
  %213 = vmatpush1.bf16.msra.mxu0 %v190
  %214 = vmatprep.subr.bf16.mxu0 0
  %215 = vmatpush1.bf16.msra.mxu0 %v191
  %216 = vmatprep.subr.bf16.mxu0 0
  %217 = vmatpush1.bf16.msra.mxu0 0
  %218 = vmatprep.subr.bf16.mxu0 0
  %219 = vmatpush1.bf16.msra.mxu0 0
  %220 = vmatprep.subr.bf16.mxu0 0
  %221 = vmatpush1.bf16.msra.mxu0 0
  %222 = vmatprep.subr.bf16.mxu0 0
  %223 = vmatpush1.bf16.msra.mxu0 0
  %224 = vmatprep.subr.bf16.mxu0 0
  %225 = vmatpush1.bf16.msra.mxu0 0
  %226 = vmatprep.subr.bf16.mxu0 0
  %227 = vmatpush1.bf16.msra.mxu0 0
  %228 = vmatprep.subr.bf16.mxu0 0
  %229 = vmatpush1.bf16.msra.mxu0 0
  %230 = vmatprep.subr.bf16.mxu0 0
  %231 = vmatpush1.bf16.msra.mxu0 0
  %232 = vmatprep.mubr.bf16.mxu0 0
  %233 = vmatmul.mubr.bf16.gmra.mrb[0].mxu0 %v128
  %v234 = vpop.f32.mrb[0].mxu0
  %v235 = vadd.f32 %v150, %v234
  %v236 = vpop.f32.mrb[0].mxu0
  %v237 = vpop.f32.mrb[0].mxu0
  %v238 = vpop.f32.mrb[0].mxu0
  %239 = vdwg.mxu0
  %v240 = vmax.f32 %v235, 0.0
  %v241 = vld [vmem:[%s7] sm:$0x1]
  %v243 = vlaneseq
  %v244 = vshrl.u32 %v243, 7
  %v245 = vsub.s32 0, %v244
  %v246 = vrot.slane %v241, %v245
  %v248 = vmul.f32 %v240, %v246
  %vm249 = vcmask 523264
  %v250 = vsel %vm249, %v248, 0.0
  %251 = vadd.xlane.f32.xlu0 %v250
  %v252 = vpop.xlane.xlu0 %251
  %v253 = vld [vmem:[#allocation2] sm:$0x1]
  %v255 = vlaneseq
  %v256 = vshrl.u32 %v255, 7
  %v257 = vsub.s32 0, %v256
  %v258 = vrot.slane %v253, %v257
  %v260 = vadd.f32 %v252, %v258
  %vm261 = vcmask 7168
  %262 = vst.msk [vmem:[%s9] sm:$0xff] %vm261, %v260
  // Predicated region
  $region38: #{tpu_custom_call.1} parent=0 // pred_check
    _
  $region39: #{tpu_custom_call.1} parent=0 // pred_check_branch
    %264 = sbr.rel (0) target = $region41
  $region40: #{tpu_custom_call.1} parent=0 // pred_region
    _
  $region41: #{tpu_custom_call.1} parent=0 // pred_fallthru
    _
  // Predicated region
  $region42: #{tpu_custom_call.1} parent=0 // pred_check
    _
  $region43: #{tpu_custom_call.1} parent=0 // pred_check_branch
    %266 = sbr.rel (0) target = $region45
  $region44: #{tpu_custom_call.1} parent=0 // pred_region
    _
  $region45: #{tpu_custom_call.1} parent=0 // pred_fallthru
    _

</llo_original>
